<compile_context>
chip_gen: v5e
topology: v5e:2x2
jax: 0.10.0
libtpu: 0.0.40
codegen_flags: <defaults>
</compile_context>

<pallas_src>
import math
import functools

import jax
import jax.numpy as jnp
from jax import lax
from jax.experimental import pallas as pl
from jax.experimental.pallas import tpu as pltpu

TEMPERATURE = 100.0
SINKHORN_UNROLL = 20


def _round_up(x, m):
    return ((x + m - 1) // m) * m


# ----------------------------------------------------------------------------
# Kernel 1: PermutationMatrix.forward (Sinkhorn) -> permuted lower-triangular
# mask, fused with the one-time masking + lane-aligned bf16 packing of the GRU
# weights.  Everything runs at the lane-padded size (Hp, Hp); padded entries of
# the Sinkhorn matrix are forced to zero so the padded rows/cols of the
# resulting mask (and hence of the packed weights) are exactly zero.
# ----------------------------------------------------------------------------
def sinkhorn_premask_kernel(perm_ref, w_ref,
                            lower_ref, wi_ref, whrz_ref, whn_ref, *, H, Hp):
    row = lax.broadcasted_iota(jnp.int32, (Hp, Hp), 0)
    col = lax.broadcasted_iota(jnp.int32, (Hp, Hp), 1)
    valid = (row < H) & (col < H)

    # exp(T * (m - max(m))); padded entries -> exp(-huge) == 0
    m = jnp.where(valid, perm_ref[...], -1e30)
    m = jnp.exp(TEMPERATURE * (m - jnp.max(m)))

    def body(_, mm):
        # Guarded normalization: padded rows/cols sum to 0 -> divide by 1 and
        # stay exactly 0; real rows/cols are untouched by the guard.
        rs = jnp.sum(mm, axis=1, keepdims=True)
        mm = mm * pl.reciprocal(jnp.where(rs == 0.0, 1.0, rs), approx=True)
        cs = jnp.sum(mm, axis=0, keepdims=True)
        mm = mm * pl.reciprocal(jnp.where(cs == 0.0, 1.0, cs), approx=True)
        return mm

    m = lax.fori_loop(0, SINKHORN_UNROLL, body, m)

    upper = (row <= col).astype(jnp.float32)               # tril(ones)^T
    # output_lower = (M @ L @ M^T)^T == M @ L^T @ M^T.  Zero padding of M keeps
    # the padded rows/cols of the result zero.
    pu = jnp.dot(m, upper, preferred_element_type=jnp.float32)
    lower = lax.dot_general(pu, m, dimension_numbers=(((1,), (1,)), ((), ())),
                            preferred_element_type=jnp.float32)
    lower_ref[...] = lower        # PermutationMatrix.forward output (padded)

    # Mask the GRU weights ONCE and pack them into lane-aligned bf16 gate
    # blocks.  All stores below are full-width, 128-lane-aligned stores.
    bt = jnp.bfloat16
    wi_ref[:, 0:Hp] = (w_ref[0] * lower).astype(bt)        # W_ir
    wi_ref[:, Hp:2 * Hp] = (w_ref[1] * lower).astype(bt)   # W_iz
    wi_ref[:, 2 * Hp:3 * Hp] = (w_ref[2] * lower).astype(bt)  # W_in
    whrz_ref[:, 0:Hp] = (w_ref[3] * lower).astype(bt)      # W_hr
    whrz_ref[:, Hp:2 * Hp] = (w_ref[4] * lower).astype(bt)  # W_hz
    whn_ref[...] = (w_ref[5] * lower).astype(bt)            # W_hn


def preprocess(perm_p, w_p, *, H, Hp):
    # TODO(synk): for very large H (>= ~768 on v7x) this unblocked preprocess
    # should be tiled per gate block / have vmem_limit_bytes raised.
    vmem = pl.BlockSpec(memory_space=pltpu.MemorySpace.VMEM)
    return pl.pallas_call(
        functools.partial(sinkhorn_premask_kernel, H=H, Hp=Hp),
        out_shape=(jax.ShapeDtypeStruct((Hp, Hp), jnp.float32),       # output_lower (padded)
                   jax.ShapeDtypeStruct((Hp, 3 * Hp), jnp.bfloat16),  # [W_ir|W_iz|W_in]
                   jax.ShapeDtypeStruct((Hp, 2 * Hp), jnp.bfloat16),  # [W_hr|W_hz]
                   jax.ShapeDtypeStruct((Hp, Hp), jnp.bfloat16)),     # W_hn
        in_specs=[vmem, vmem],
        out_specs=(vmem, vmem, vmem, vmem),
    )(perm_p, w_p)


# ----------------------------------------------------------------------------
# Kernel 2: permuted GRU over a block of Tc timesteps + DKT head.
# The input-gate matmul is hoisted out of the recurrence (computed for the whole
# block up front); the hidden state persists in VMEM scratch across grid steps.
# ----------------------------------------------------------------------------
def gru_dkt_kernel(wi_ref, whrz_ref, whn_ref, wb_ref, c_ref, y_ref,
                   loss_ref, acc_ref, h_scr, gi_scr, ind_scr,
                   *, Hp, B, Tc, chunk, inv_denom):
    g = pl.program_id(0)

    @pl.when(g == 0)
    def _init():
        h_scr[...] = jnp.zeros_like(h_scr)
        loss_ref[...] = jnp.zeros_like(loss_ref)
        acc_ref[...] = jnp.zeros_like(acc_ref)

    whrz = whrz_ref[...]                   # (Hp, 2Hp) bf16, pre-masked + padded
    whn = whn_ref[...]                     # (Hp, Hp)  bf16
    w_o = wb_ref[0]                        # Linear(1,1) weight (SMEM scalar)
    b_o = wb_ref[1]                        # Linear(1,1) bias

    rows = Tc * B

    # ---- Hoisted input-gate path: one-hot X for the whole block, then a few
    # wide MXU matmuls (chunked to bound register pressure) feeding VMEM scratch.
    wi = wi_ref[...]                                        # (Hp, 3Hp) bf16
    lane_c = lax.broadcasted_iota(jnp.int32, (chunk, Hp), 1)
    for ci in range(rows // chunk):                         # static, few iters
        off = ci * chunk
        c_blk = c_ref[off:off + chunk, :]                   # (chunk, 1) int32
        y_blk = y_ref[off:off + chunk, :]                   # (chunk, 1) f32
        ind = (lane_c == c_blk).astype(jnp.float32)         # one-hot indicator
        ind_scr[off:off + chunk, :] = ind
        x = ind * y_blk                                     # scatter_ of labels
        gi_scr[off:off + chunk, :] = jnp.dot(
            x.astype(jnp.bfloat16), wi, preferred_element_type=jnp.float32)

    def sigmoid(v):                        # EUP slot (exp + approx reciprocal)
        return pl.reciprocal(1.0 + jnp.exp(-v), approx=True)

    def step(t, carry):
        h, lsum, asum = carry
        r0 = pl.multiple_of(t * B, B)
        gi = gi_scr[pl.ds(r0, B), :]                        # (B, 3Hp) f32
        gh = jnp.dot(h.astype(whrz.dtype), whrz,
                     preferred_element_type=jnp.float32)    # (B, 2Hp)
        r = sigmoid(gi[:, 0:Hp] + gh[:, 0:Hp])
        z = sigmoid(gi[:, Hp:2 * Hp] + gh[:, Hp:2 * Hp])
        # NOTE: reset gate applied to h BEFORE the W_hn matmul (original cell).
        gn = jnp.dot((r * h).astype(whn.dtype), whn,
                     preferred_element_type=jnp.float32)    # (B, Hp)
        n = jnp.tanh(gi[:, 2 * Hp:3 * Hp] + gn)
        hy = h * z + (1.0 - z) * n

        ind_t = ind_scr[pl.ds(r0, B), :]                    # (B, Hp)
        y_raw = y_ref[pl.ds(r0, B), :]                      # (B, 1)
        h_sel = jnp.sum(hy * ind_t, axis=1, keepdims=True)  # gather -> (B, 1)
        logit = w_o * h_sel + b_o
        # TODO(synk): missing-label masking (labels < 0) is not applied; loss
        # and accuracy follow the previous accepted semantics (clamp + T*B).
        y = jnp.maximum(y_raw, 0.0)                         # clamp(min=0)
        # BCEWithLogits (stable): max(x,0) - x*y + log(1 + exp(-|x|))
        bce = (jnp.maximum(logit, 0.0) - logit * y
               + jnp.log(1.0 + jnp.exp(-jnp.abs(logit))))
        pred = (logit > 0.0).astype(jnp.float32)
        correct = (pred == y).astype(jnp.float32)
        return hy, lsum + bce, asum + correct

    # Partial (<=8-wide) unroll: outer fori_loop over Tc//u, u steps per body.
    u = math.gcd(Tc, 8)

    def outer(bi, carry):
        cc = carry
        for uu in range(u):
            cc = step(bi * u + uu, cc)
        return cc

    zero_b1 = jnp.zeros((B, 1), jnp.float32)
    hT, lsum, asum = lax.fori_loop(0, Tc // u, outer,
                                   (h_scr[...], zero_b1, zero_b1))
    h_scr[...] = hT
    loss_ref[...] += jnp.sum(lsum, axis=0, keepdims=True)
    acc_ref[...] += jnp.sum(asum, axis=0, keepdims=True)

    @pl.when(g == pl.num_programs(0) - 1)
    def _finalize():
        loss_ref[...] = loss_ref[...] * inv_denom
        acc_ref[...] = acc_ref[...] * inv_denom


# ----------------------------------------------------------------------------
# Wrapper: PermutedDKT.forward(concept_input, labels) -> (loss, acc)
# ----------------------------------------------------------------------------
def _pick_tc(T, B, Hp, vmem_budget=6 * 1024 * 1024):
    # Largest divisor of T whose per-block scratch (gi + ind, f32) fits budget.
    bytes_per_step = B * (3 * Hp + Hp) * 4
    max_tc = max(1, vmem_budget // bytes_per_step)
    best = 1
    for cand in range(1, T + 1):
        if T % cand == 0 and cand <= max_tc:
            best = cand
    return best


def _pick_chunk(rows, cap=128):
    best = 1
    for cand in range(1, min(rows, cap) + 1):
        if rows % cand == 0:
            best = cand
    return best


def permuted_dkt_forward(params, concept_input, labels, *, tc=None):
    T, B = concept_input.shape
    H = params["perm"].shape[0]
    Hp = _round_up(H, 128)               # lane-pad the concept/hidden dimension

    if tc is None:
        tc = _pick_tc(T, B, Hp)          # T=64 -> tc=64 -> grid=(1,)
    assert T % tc == 0
    rows = tc * B
    chunk = _pick_chunk(rows)

    # Pad the permutation parameter and the 6 GRU weights to (Hp, Hp) (XLA-side,
    # one time).  The preprocess kernel masks, packs and casts them to bf16.
    perm_p = jnp.zeros((Hp, Hp), jnp.float32).at[:H, :H].set(
        params["perm"].astype(jnp.float32))
    w_stack = jnp.stack([params["W_ir"], params["W_iz"], params["W_in"],
                         params["W_hr"], params["W_hz"], params["W_hn"]]
                        ).astype(jnp.float32)
    w_p = jnp.zeros((6, Hp, Hp), jnp.float32).at[:, :H, :H].set(w_stack)

    # lower_p[:H, :H] is PermutationMatrix.forward's output_lower; it is already
    # folded into the packed weights below (kept as an output for module parity).
    lower_p, wi, whrz, whn = preprocess(perm_p, w_p, H=H, Hp=Hp)
    del lower_p

    concept = concept_input.astype(jnp.int32).reshape(T * B, 1)   # (T*B, 1)
    labs = labels.astype(jnp.float32).reshape(T * B, 1)           # (T*B, 1)
    wb = jnp.stack([params["out_w"], params["out_b"]]).astype(jnp.float32)

    kernel = functools.partial(gru_dkt_kernel, Hp=Hp, B=B, Tc=tc, chunk=chunk,
                               inv_denom=1.0 / float(T * B))

    loss, acc = pl.pallas_call(
        kernel,
        out_shape=(jax.ShapeDtypeStruct((1, 1), jnp.float32),
                   jax.ShapeDtypeStruct((1, 1), jnp.float32)),
        grid_spec=pltpu.PrefetchScalarGridSpec(
            num_scalar_prefetch=0,
            grid=(T // tc,),
            in_specs=[
                # Loop-invariant weight blocks (constant index_map -> no re-DMA
                # across grid steps).
                pl.BlockSpec((Hp, 3 * Hp), lambda g: (0, 0)),   # [W_ir|W_iz|W_in]
                pl.BlockSpec((Hp, 2 * Hp), lambda g: (0, 0)),   # [W_hr|W_hz]
                pl.BlockSpec((Hp, Hp), lambda g: (0, 0)),       # W_hn
                pl.BlockSpec(memory_space=pltpu.MemorySpace.SMEM),  # out layer (w, b)
                pl.BlockSpec((rows, 1), lambda g: (g, 0)),      # concept ids
                pl.BlockSpec((rows, 1), lambda g: (g, 0)),      # labels
            ],
            out_specs=[
                pl.BlockSpec((1, 1), lambda g: (0, 0)),
                pl.BlockSpec((1, 1), lambda g: (0, 0)),
            ],
            scratch_shapes=[
                pltpu.VMEM((B, Hp), jnp.float32),               # recurrent hidden state
                pltpu.VMEM((rows, 3 * Hp), jnp.float32),        # hoisted input-gate acts
                pltpu.VMEM((rows, Hp), jnp.float32),            # one-hot indicators
            ],
        ),
        compiler_params=pltpu.CompilerParams(
            dimension_semantics=("arbitrary",)),   # sequential recurrence over time
    )(wi, whrz, whn, wb, concept, labs)

    # TODO(synk): v7x second-TensorCore batch sharding and MXU-resident RHS
    # (pltpu.matmul_push_rhs/...) are intentionally not applied here.
    return loss[0, 0], acc[0, 0]


# ----------------------------------------------------------------------------
# Deterministic parameter init (kaiming_uniform a=sqrt(5) -> U(+-1/sqrt(fan_in)))
# ----------------------------------------------------------------------------
def init_params(key, n_concepts):
    H = n_concepts
    keys = jax.random.split(key, 9)
    bound = 1.0 / math.sqrt(H)

    def ku(k):
        return jax.random.uniform(k, (H, H), jnp.float32, -bound, bound)

    return {
        "perm": ku(keys[0]),
        "W_ir": ku(keys[1]),
        "W_hr": ku(keys[2]),
        "W_iz": ku(keys[3]),
        "W_hz": ku(keys[4]),
        "W_in": ku(keys[5]),
        "W_hn": ku(keys[6]),
        # nn.Linear(1, 1): fan_in = 1 -> U(-1, 1) for weight and bias
        "out_w": jax.random.uniform(keys[7], (), jnp.float32, -1.0, 1.0),
        "out_b": jax.random.uniform(keys[8], (), jnp.float32, -1.0, 1.0),
    }


if __name__ == "__main__":
    T, B, H = 64, 8, 16          # seq len, batch, n_concepts
    key = jax.random.PRNGKey(0)
    k_params, k_concept, k_label = jax.random.split(key, 3)

    params = init_params(k_params, H)
    concept_input = jax.random.randint(k_concept, (T, B), 0, H, dtype=jnp.int32)
    labels = jax.random.randint(k_label, (T, B), 0, 2, dtype=jnp.int32)

    loss, acc = permuted_dkt_forward(params, concept_input, labels)
    loss = jax.block_until_ready(loss)
    acc = jax.block_until_ready(acc)
    print("KERNEL_OK")
</pallas_src>

<mosaic_0001>
module attributes {stable_mosaic.version = 11 : i64} {
  func.func @sinkhorn_premask_kernel(%arg0: memref<128x128xf32, #tpu.memory_space<vmem>>, %arg1: memref<6x128x128xf32, #tpu.memory_space<vmem>>, %arg2: memref<128x128xf32, #tpu.memory_space<vmem>>, %arg3: memref<128x384xbf16, #tpu.memory_space<vmem>>, %arg4: memref<128x256xbf16, #tpu.memory_space<vmem>>, %arg5: memref<128x128xbf16, #tpu.memory_space<vmem>>) attributes {dimension_semantics = [], scalar_prefetch = 0 : i64, scratch_operands = 0 : i64, tpu.core_type = #tpu.core_type<tc>} {
    %0 = tpu.iota {dimensions = array<i32: 0>} : vector<128x128xi32>
    %1 = tpu.iota {dimensions = array<i32: 1>} : vector<128x128xi32>
    %c16_i32 = arith.constant 16 : i32
    %2 = vector.broadcast %c16_i32 : i32 to vector<128x128xi32>
    %3 = arith.cmpi slt, %0, %2 : vector<128x128xi32>
    %c16_i32_0 = arith.constant 16 : i32
    %4 = vector.broadcast %c16_i32_0 : i32 to vector<128x128xi32>
    %5 = arith.cmpi slt, %1, %4 : vector<128x128xi32>
    %6 = arith.andi %3, %5 : vector<128x128xi1>
    %c0 = arith.constant 0 : index
    %c0_1 = arith.constant 0 : index
    %7 = vector.load %arg0[%c0, %c0_1] : memref<128x128xf32, #tpu.memory_space<vmem>>, vector<128x128xf32>
    %cst = arith.constant -1.000000e+30 : f32
    %8 = vector.broadcast %cst : f32 to vector<128x128xf32>
    %9 = arith.select %6, %7, %8 : vector<128x128xi1>, vector<128x128xf32>
    %10 = vector.shape_cast %9 : vector<128x128xf32> to vector<1x128x128xf32>
    %cst_2 = arith.constant dense<0xFF800000> : vector<1xf32>
    %11 = vector.multi_reduction <maximumf>, %10, %cst_2 [1, 2] : vector<1x128x128xf32> to vector<1xf32>
    %12 = vector.shape_cast %11 : vector<1xf32> to vector<1x1x1xf32>
    %13 = vector.extract %12[0, 0, 0] : f32 from vector<1x1x1xf32>
    %14 = vector.broadcast %13 : f32 to vector<128x128xf32>
    %15 = arith.subf %9, %14 : vector<128x128xf32>
    %cst_3 = arith.constant 1.000000e+02 : f32
    %16 = vector.broadcast %cst_3 : f32 to vector<128x128xf32>
    %17 = arith.mulf %16, %15 : vector<128x128xf32>
    %18 = math.exp %17 : vector<128x128xf32>
    %c0_i32 = arith.constant 0 : i32
    %c20_i32 = arith.constant 20 : i32
    %19 = arith.addi %c0_i32, %c20_i32 : i32
    %c1_i32 = arith.constant 1 : i32
    %20 = scf.for %arg6 = %c0_i32 to %19 step %c1_i32 iter_args(%arg7 = %18) -> (vector<128x128xf32>)  : i32 {
      %cst_31 = arith.constant dense<0.000000e+00> : vector<128xf32>
      %57 = vector.multi_reduction <add>, %arg7, %cst_31 [1] : vector<128x128xf32> to vector<128xf32>
      %58 = vector.shape_cast %57 : vector<128xf32> to vector<128x1xf32>
      %cst_32 = arith.constant 0.000000e+00 : f32
      %59 = vector.broadcast %cst_32 : f32 to vector<128x1xf32>
      %60 = arith.cmpf oeq, %58, %59 : vector<128x1xf32>
      %cst_33 = arith.constant 1.000000e+00 : f32
      %61 = vector.broadcast %cst_33 : f32 to vector<128x1xf32>
      %62 = arith.select %60, %61, %58 : vector<128x1xi1>, vector<128x1xf32>
      %63 = tpu.reciprocal %62 {approx = true} : vector<128x1xf32> -> vector<128x1xf32>
      %64 = vector.broadcast %63 : vector<128x1xf32> to vector<128x128xf32>
      %65 = arith.mulf %arg7, %64 : vector<128x128xf32>
      %cst_34 = arith.constant dense<0.000000e+00> : vector<128xf32>
      %66 = vector.multi_reduction <add>, %65, %cst_34 [0] : vector<128x128xf32> to vector<128xf32>
      %67 = vector.shape_cast %66 : vector<128xf32> to vector<1x128xf32>
      %cst_35 = arith.constant 0.000000e+00 : f32
      %68 = vector.broadcast %cst_35 : f32 to vector<1x128xf32>
      %69 = arith.cmpf oeq, %67, %68 : vector<1x128xf32>
      %cst_36 = arith.constant 1.000000e+00 : f32
      %70 = vector.broadcast %cst_36 : f32 to vector<1x128xf32>
      %71 = arith.select %69, %70, %67 : vector<1x128xi1>, vector<1x128xf32>
      %72 = tpu.reciprocal %71 {approx = true} : vector<1x128xf32> -> vector<1x128xf32>
      %73 = vector.broadcast %72 : vector<1x128xf32> to vector<128x128xf32>
      %74 = arith.mulf %65, %73 : vector<128x128xf32>
      scf.yield %74 : vector<128x128xf32>
    }
    %21 = arith.cmpi sle, %0, %1 : vector<128x128xi32>
    %22 = arith.extui %21 : vector<128x128xi1> to vector<128x128xi32>
    %23 = arith.sitofp %22 : vector<128x128xi32> to vector<128x128xf32>
    %cst_4 = arith.constant dense<0.000000e+00> : vector<128x128xf32>
    %24 = tpu.matmul %20, %23, %cst_4 {dimension_numbers = #tpu.dot_dimension_numbers<[1], [0], [0], [1], [0, 0, 1, 1], [], []>} : vector<128x128xf32>, vector<128x128xf32>, vector<128x128xf32> -> vector<128x128xf32>
    %cst_5 = arith.constant dense<0.000000e+00> : vector<128x128xf32>
    %25 = tpu.matmul %24, %20, %cst_5 {dimension_numbers = #tpu.dot_dimension_numbers<[1], [1], [0], [0], [0, 0, 1, 0], [], []>} : vector<128x128xf32>, vector<128x128xf32>, vector<128x128xf32> -> vector<128x128xf32>
    %c0_6 = arith.constant 0 : index
    %c0_7 = arith.constant 0 : index
    %26 = vector.load %arg2[%c0_6, %c0_7] : memref<128x128xf32, #tpu.memory_space<vmem>>, vector<128x128xf32>
    tpu.vector_store %arg2[%c0_6, %c0_7], %25 {strides = array<i32>} : memref<128x128xf32, #tpu.memory_space<vmem>>, vector<128x128xf32>,
    %c0_8 = arith.constant 0 : index
    %c0_9 = arith.constant 0 : index
    %c0_10 = arith.constant 0 : index
    %27 = vector.load %arg1[%c0_8, %c0_9, %c0_10] : memref<6x128x128xf32, #tpu.memory_space<vmem>>, vector<1x128x128xf32>
    %28 = vector.shape_cast %27 : vector<1x128x128xf32> to vector<128x128xf32>
    %29 = arith.mulf %28, %25 : vector<128x128xf32>
    %30 = arith.truncf %29 : vector<128x128xf32> to vector<128x128xbf16>
    %c0_11 = arith.constant 0 : index
    %c0_12 = arith.constant 0 : index
    %31 = vector.load %arg3[%c0_11, %c0_12] : memref<128x384xbf16, #tpu.memory_space<vmem>>, vector<128x128xbf16>
    tpu.vector_store %arg3[%c0_11, %c0_12], %30 {strides = array<i32>} : memref<128x384xbf16, #tpu.memory_space<vmem>>, vector<128x128xbf16>,
    %c1 = arith.constant 1 : index
    %c0_13 = arith.constant 0 : index
    %c0_14 = arith.constant 0 : index
    %32 = vector.load %arg1[%c1, %c0_13, %c0_14] : memref<6x128x128xf32, #tpu.memory_space<vmem>>, vector<1x128x128xf32>
    %33 = vector.shape_cast %32 : vector<1x128x128xf32> to vector<128x128xf32>
    %34 = arith.mulf %33, %25 : vector<128x128xf32>
    %35 = arith.truncf %34 : vector<128x128xf32> to vector<128x128xbf16>
    %c0_15 = arith.constant 0 : index
    %c128 = arith.constant 128 : index
    %36 = vector.load %arg3[%c0_15, %c128] : memref<128x384xbf16, #tpu.memory_space<vmem>>, vector<128x128xbf16>
    tpu.vector_store %arg3[%c0_15, %c128], %35 {strides = array<i32>} : memref<128x384xbf16, #tpu.memory_space<vmem>>, vector<128x128xbf16>,
    %c2 = arith.constant 2 : index
    %c0_16 = arith.constant 0 : index
    %c0_17 = arith.constant 0 : index
    %37 = vector.load %arg1[%c2, %c0_16, %c0_17] : memref<6x128x128xf32, #tpu.memory_space<vmem>>, vector<1x128x128xf32>
    %38 = vector.shape_cast %37 : vector<1x128x128xf32> to vector<128x128xf32>
    %39 = arith.mulf %38, %25 : vector<128x128xf32>
    %40 = arith.truncf %39 : vector<128x128xf32> to vector<128x128xbf16>
    %c0_18 = arith.constant 0 : index
    %c256 = arith.constant 256 : index
    %41 = vector.load %arg3[%c0_18, %c256] : memref<128x384xbf16, #tpu.memory_space<vmem>>, vector<128x128xbf16>
    tpu.vector_store %arg3[%c0_18, %c256], %40 {strides = array<i32>} : memref<128x384xbf16, #tpu.memory_space<vmem>>, vector<128x128xbf16>,
    %c3 = arith.constant 3 : index
    %c0_19 = arith.constant 0 : index
    %c0_20 = arith.constant 0 : index
    %42 = vector.load %arg1[%c3, %c0_19, %c0_20] : memref<6x128x128xf32, #tpu.memory_space<vmem>>, vector<1x128x128xf32>
    %43 = vector.shape_cast %42 : vector<1x128x128xf32> to vector<128x128xf32>
    %44 = arith.mulf %43, %25 : vector<128x128xf32>
    %45 = arith.truncf %44 : vector<128x128xf32> to vector<128x128xbf16>
    %c0_21 = arith.constant 0 : index
    %c0_22 = arith.constant 0 : index
    %46 = vector.load %arg4[%c0_21, %c0_22] : memref<128x256xbf16, #tpu.memory_space<vmem>>, vector<128x128xbf16>
    tpu.vector_store %arg4[%c0_21, %c0_22], %45 {strides = array<i32>} : memref<128x256xbf16, #tpu.memory_space<vmem>>, vector<128x128xbf16>,
    %c4 = arith.constant 4 : index
    %c0_23 = arith.constant 0 : index
    %c0_24 = arith.constant 0 : index
    %47 = vector.load %arg1[%c4, %c0_23, %c0_24] : memref<6x128x128xf32, #tpu.memory_space<vmem>>, vector<1x128x128xf32>
    %48 = vector.shape_cast %47 : vector<1x128x128xf32> to vector<128x128xf32>
    %49 = arith.mulf %48, %25 : vector<128x128xf32>
    %50 = arith.truncf %49 : vector<128x128xf32> to vector<128x128xbf16>
    %c0_25 = arith.constant 0 : index
    %c128_26 = arith.constant 128 : index
    %51 = vector.load %arg4[%c0_25, %c128_26] : memref<128x256xbf16, #tpu.memory_space<vmem>>, vector<128x128xbf16>
    tpu.vector_store %arg4[%c0_25, %c128_26], %50 {strides = array<i32>} : memref<128x256xbf16, #tpu.memory_space<vmem>>, vector<128x128xbf16>,
    %c5 = arith.constant 5 : index
    %c0_27 = arith.constant 0 : index
    %c0_28 = arith.constant 0 : index
    %52 = vector.load %arg1[%c5, %c0_27, %c0_28] : memref<6x128x128xf32, #tpu.memory_space<vmem>>, vector<1x128x128xf32>
    %53 = vector.shape_cast %52 : vector<1x128x128xf32> to vector<128x128xf32>
    %54 = arith.mulf %53, %25 : vector<128x128xf32>
    %55 = arith.truncf %54 : vector<128x128xf32> to vector<128x128xbf16>
    %c0_29 = arith.constant 0 : index
    %c0_30 = arith.constant 0 : index
    %56 = vector.load %arg5[%c0_29, %c0_30] : memref<128x128xbf16, #tpu.memory_space<vmem>>, vector<128x128xbf16>
    tpu.vector_store %arg5[%c0_29, %c0_30], %55 {strides = array<i32>} : memref<128x128xbf16, #tpu.memory_space<vmem>>, vector<128x128xbf16>,
    return
  }
}

</mosaic_0001>

<llo_original>
// kernel: tpu_custom_call.1
$region0: #{tpu_custom_call.1}
  #allocation0 [shape = 'u32[]', space=smem, size = 0x4, offset = 0x4, fixed_abs, tag = 'smem constant byte address 0x4 - core index']
  #allocation1 [shape = 'u32[72,128]{1,0:T(1,128)}', space=vmem, size = 0x9000, scoped, tag = 'internal scratch']
  %s0 = inlined_call_operand.hbm [shape: f32[128,128], index: 0, kind: input, shape index: {}]
  %s1 = inlined_call_operand.hbm [shape: f32[6,128,128], index: 1, kind: input, shape index: {}]
  %s2 = inlined_call_operand.hbm [shape: f32[128,128], index: 2, kind: output, shape index: {0}]
  %s3 = inlined_call_operand.hbm [shape: bf16[128,384], index: 3, kind: output, shape index: {1}]
  %s4 = inlined_call_operand.hbm [shape: bf16[128,256], index: 4, kind: output, shape index: {2}]
  %s5 = inlined_call_operand.hbm [shape: bf16[128,128], index: 5, kind: output, shape index: {3}]
  %6 = xla_tuple %s2, %s3, %s4, %s5
  %s7 = sld [smem:[#allocation0]]
  $region57: #{tpu_custom_call.1} parent=0
    _
  %s9 = ssub.s32 1, %s7
  %s10 = scalar_select 0, %s9, %s7
  $region1: #{tpu_custom_call.1} parent=0
    #allocation2 [shape = 'u8[65536]{0}', space=vmem, size = 0x10000, scoped, tag = 'input window, operand 0, single buffered']
    #allocation3 [shape = 's32[1]{0}', space=sflag, size = 0x4, scoped, tag = 'scoped memory for tpu_custom_call.1']
    #allocation4 [shape = 's32[1]{0}', space=sflag, size = 0x4, scoped, tag = 'scoped memory for tpu_custom_call.1']
    #allocation5 [shape = 'u8[393216]{0}', space=vmem, size = 0x60000, scoped, tag = 'input window, operand 1, single buffered']
    #allocation6 [shape = 's32[1]{0}', space=sflag, size = 0x4, scoped, tag = 'scoped memory for tpu_custom_call.1']
    #allocation7 [shape = 'u8[65536]{0}', space=vmem, size = 0x10000, scoped, tag = 'output window, operand 0, single buffered']
    #allocation8 [shape = 'u8[98304]{0}', space=vmem, size = 0x18000, scoped, tag = 'output window, operand 1, single buffered']
    #allocation9 [shape = 's32[1]{0}', space=sflag, size = 0x4, scoped, tag = 'scoped memory for tpu_custom_call.1']
    #allocation10 [shape = 'u8[65536]{0}', space=vmem, size = 0x10000, scoped, tag = 'output window, operand 2, single buffered']
    #allocation11 [shape = 'u8[32768]{0}', space=vmem, size = 0x8000, scoped, tag = 'output window, operand 3, single buffered']
    #allocation12 [shape = 's32[1]{0}', space=sflag, size = 0x4, scoped, tag = 'scoped memory for tpu_custom_call.1']
    %11 = vsyncpa [#allocation3], 0
    %12 = vsyncpa [#allocation6], 0
    %13 = vsyncpa [#allocation4], 0
    %14 = vsyncpa [#allocation9], 0
    %15 = vsyncpa [#allocation12], 0
    // Predicated region
    $region2: #{tpu_custom_call.1} parent=1 // pred_check
      _
    $region3: #{tpu_custom_call.1} parent=1 // pred_check_branch
      %17 = sbr.rel (0) target = $region5
    $region4: #{tpu_custom_call.1} parent=1 // pred_region
      %19 = vsyncadd [#allocation3], 0
      %s20 = sshll.u32 %s0, 4
      %s21 = int_to_ptr.hbm [resolvable:$true] %s20
      %s22 = sshll.u32 [#allocation2], 4
      %s23 = int_to_ptr.vmem [resolvable:$true] %s22
      %28 = dma.hbm_to_vmem [thread:$0]  %s21, 2048, %s23, [#allocation3], 128, 128, 8
    $region5: #{tpu_custom_call.1} parent=1 // pred_fallthru
      _
    // Predicated region
    $region6: #{tpu_custom_call.1} parent=1 // pred_check
      _
    $region7: #{tpu_custom_call.1} parent=1 // pred_check_branch
      %30 = sbr.rel (0) target = $region9
    $region8: #{tpu_custom_call.1} parent=1 // pred_region
      %32 = vsyncadd [#allocation6], 0
      %s33 = sshll.u32 %s1, 4
      %s34 = int_to_ptr.hbm [resolvable:$true] %s33
      %s35 = sshll.u32 [#allocation5], 4
      %s36 = int_to_ptr.vmem [resolvable:$true] %s35
      %41 = dma.hbm_to_vmem [thread:$0]  %s34, 12288, %s36, [#allocation6], 128, 128, 8
    $region9: #{tpu_custom_call.1} parent=1 // pred_fallthru
      _
    // Predicated region
    $region10: #{tpu_custom_call.1} parent=1 // pred_check
      _
    $region11: #{tpu_custom_call.1} parent=1 // pred_check_branch
      %43 = sbr.rel (0) target = $region13
    $region12: #{tpu_custom_call.1} parent=1 // pred_region
      %45 = dma.done [#allocation3], 2048
    $region13: #{tpu_custom_call.1} parent=1 // pred_fallthru
      _
    // Predicated region
    $region14: #{tpu_custom_call.1} parent=1 // pred_check
      _
    $region15: #{tpu_custom_call.1} parent=1 // pred_check_branch
      %47 = sbr.rel (0) target = $region17
    $region16: #{tpu_custom_call.1} parent=1 // pred_region
      %49 = dma.done [#allocation6], 12288
    $region17: #{tpu_custom_call.1} parent=1 // pred_fallthru
      _
    %v50 = vlaneseq
    %v51 = vshrl.u32 %v50, 7
    %v52 = vadd.s32 %v51, 8
    %v53 = vadd.s32 %v51, 16
    %v54 = vadd.s32 %v51, 24
    %v55 = vadd.s32 %v51, 32
    %v56 = vadd.s32 %v51, 40
    %v57 = vadd.s32 %v51, 48
    %v58 = vadd.s32 %v51, 56
    %v59 = vadd.s32 %v51, 64
    %v60 = vadd.s32 %v51, 72
    %v61 = vadd.s32 %v51, 80
    %v62 = vadd.s32 %v51, 88
    %v63 = vadd.s32 %v51, 96
    %v64 = vadd.s32 %v51, 104
    %v65 = vadd.s32 %v51, 112
    %v66 = vadd.s32 %v51, 120
    %v67 = vlaneseq
    %v68 = vand.u32 %v67, 127
    %vm69 = vcmp.lt.s32.totalorder %v51, 16
    %vm70 = vcmp.lt.s32.totalorder %v52, 16
    %vm71 = vcmp.lt.s32.totalorder %v53, 16
    %vm72 = vcmp.lt.s32.totalorder %v54, 16
    %vm73 = vcmp.lt.s32.totalorder %v55, 16
    %vm74 = vcmp.lt.s32.totalorder %v56, 16
    %vm75 = vcmp.lt.s32.totalorder %v57, 16
    %vm76 = vcmp.lt.s32.totalorder %v58, 16
    %vm77 = vcmp.lt.s32.totalorder %v59, 16
    %vm78 = vcmp.lt.s32.totalorder %v60, 16
    %vm79 = vcmp.lt.s32.totalorder %v61, 16
    %vm80 = vcmp.lt.s32.totalorder %v62, 16
    %vm81 = vcmp.lt.s32.totalorder %v63, 16
    %vm82 = vcmp.lt.s32.totalorder %v64, 16
    %vm83 = vcmp.lt.s32.totalorder %v65, 16
    %vm84 = vcmp.lt.s32.totalorder %v66, 16
    %vm85 = vcmp.lt.s32.totalorder %v68, 16
    %vm86 = vmand %vm69, %vm85
    %vm87 = vmand %vm70, %vm85
    %vm88 = vmand %vm71, %vm85
    %vm89 = vmand %vm72, %vm85
    %vm90 = vmand %vm73, %vm85
    %vm91 = vmand %vm74, %vm85
    %vm92 = vmand %vm75, %vm85
    %vm93 = vmand %vm76, %vm85
    %vm94 = vmand %vm77, %vm85
    %vm95 = vmand %vm78, %vm85
    %vm96 = vmand %vm79, %vm85
    %vm97 = vmand %vm80, %vm85
    %vm98 = vmand %vm81, %vm85
    %vm99 = vmand %vm82, %vm85
    %vm100 = vmand %vm83, %vm85
    %vm101 = vmand %vm84, %vm85
    %v102 = vld [vmem:[#allocation2] sm:$0xff]
    %v103 = vld [vmem:[#allocation2 + $0x8] sm:$0xff]
    %v104 = vld [vmem:[#allocation2 + $0x10] sm:$0xff]
    %v105 = vld [vmem:[#allocation2 + $0x18] sm:$0xff]
    %v106 = vld [vmem:[#allocation2 + $0x20] sm:$0xff]
    %v107 = vld [vmem:[#allocation2 + $0x28] sm:$0xff]
    %v108 = vld [vmem:[#allocation2 + $0x30] sm:$0xff]
    %v109 = vld [vmem:[#allocation2 + $0x38] sm:$0xff]
    %v110 = vld [vmem:[#allocation2 + $0x40] sm:$0xff]
    %v111 = vld [vmem:[#allocation2 + $0x48] sm:$0xff]
    %v112 = vld [vmem:[#allocation2 + $0x50] sm:$0xff]
    %v113 = vld [vmem:[#allocation2 + $0x58] sm:$0xff]
    %v114 = vld [vmem:[#allocation2 + $0x60] sm:$0xff]
    %v115 = vld [vmem:[#allocation2 + $0x68] sm:$0xff]
    %v116 = vld [vmem:[#allocation2 + $0x70] sm:$0xff]
    %v117 = vld [vmem:[#allocation2 + $0x78] sm:$0xff]
    %v118 = vsel %vm86, %v102, -1e+30
    %v119 = vsel %vm87, %v103, -1e+30
    %v120 = vsel %vm88, %v104, -1e+30
    %v121 = vsel %vm89, %v105, -1e+30
    %v122 = vsel %vm90, %v106, -1e+30
    %v123 = vsel %vm91, %v107, -1e+30
    %v124 = vsel %vm92, %v108, -1e+30
    %v125 = vsel %vm93, %v109, -1e+30
    %v126 = vsel %vm94, %v110, -1e+30
    %v127 = vsel %vm95, %v111, -1e+30
    %v128 = vsel %vm96, %v112, -1e+30
    %v129 = vsel %vm97, %v113, -1e+30
    %v130 = vsel %vm98, %v114, -1e+30
    %v131 = vsel %vm99, %v115, -1e+30
    %v132 = vsel %vm100, %v116, -1e+30
    %v133 = vsel %vm101, %v117, -1e+30
    %v134 = vmax.f32 %v118, %v122
    %v135 = vmax.f32 %v119, %v123
    %v136 = vmax.f32 %v120, %v124
    %v137 = vmax.f32 %v121, %v125
    %v138 = vmax.f32 %v134, %v126
    %v139 = vmax.f32 %v135, %v127
    %v140 = vmax.f32 %v136, %v128
    %v141 = vmax.f32 %v137, %v129
    %v142 = vmax.f32 %v138, %v130
    %v143 = vmax.f32 %v139, %v131
    %v144 = vmax.f32 %v140, %v132
    %v145 = vmax.f32 %v141, %v133
    %v146 = vmax.f32 %v142, %v143
    %v147 = vmax.f32 %v144, %v145
    %v148 = vmax.f32 %v146, %v147
    %149 = vmax.xlane.f32.xlu0 %v148
    %v150 = vpop.xlane.xlu0 %149
    %v151 = vrot.slane %v150, 4
    %v152 = vmax.f32 %v150, %v151
    %v153 = vrot.slane %v152, 2
    %v154 = vmax.f32 %v152, %v153
    %v155 = vrot.slane %v154, 1
    %v156 = vmax.f32 %v154, %v155
    %s157 = vtos %v156
    %v158 = vstv %s157
    %v159 = vsub.f32 %v118, %v158
    %v160 = vsub.f32 %v119, %v158
    %v161 = vsub.f32 %v120, %v158
    %v162 = vsub.f32 %v121, %v158
    %v163 = vsub.f32 %v122, %v158
    %v164 = vsub.f32 %v123, %v158
    %v165 = vsub.f32 %v124, %v158
    %v166 = vsub.f32 %v125, %v158
    %v167 = vsub.f32 %v126, %v158
    %v168 = vsub.f32 %v127, %v158
    %v169 = vsub.f32 %v128, %v158
    %v170 = vsub.f32 %v129, %v158
    %v171 = vsub.f32 %v130, %v158
    %v172 = vsub.f32 %v131, %v158
    %v173 = vsub.f32 %v132, %v158
    %v174 = vsub.f32 %v133, %v158
    %v175 = vmul.f32 %v159, 100.0
    %v176 = vmul.f32 %v160, 100.0
    %v177 = vmul.f32 %v161, 100.0
    %v178 = vmul.f32 %v162, 100.0
    %v179 = vmul.f32 %v163, 100.0
    %v180 = vmul.f32 %v164, 100.0
    %v181 = vmul.f32 %v165, 100.0
    %v182 = vmul.f32 %v166, 100.0
    %v183 = vmul.f32 %v167, 100.0
    %v184 = vmul.f32 %v168, 100.0
    %v185 = vmul.f32 %v169, 100.0
    %v186 = vmul.f32 %v170, 100.0
    %v187 = vmul.f32 %v171, 100.0
    %v188 = vmul.f32 %v172, 100.0
    %v189 = vmul.f32 %v173, 100.0
    %v190 = vmul.f32 %v174, 100.0
    %v191 = vmul.f32 %v175, 1.442695
    %v192 = vpow.pop %v191
    %v193 = vmul.f32 %v176, 1.442695
    %v194 = vpow.pop %v193
    %v195 = vmul.f32 %v177, 1.442695
    %v196 = vpow.pop %v195
    %v197 = vmul.f32 %v178, 1.442695
    %v198 = vpow.pop %v197
    %v199 = vmul.f32 %v179, 1.442695
    %v200 = vpow.pop %v199
    %v201 = vmul.f32 %v180, 1.442695
    %v202 = vpow.pop %v201
    %v203 = vmul.f32 %v181, 1.442695
    %v204 = vpow.pop %v203
    %v205 = vmul.f32 %v182, 1.442695
    %v206 = vpow.pop %v205
    %v207 = vmul.f32 %v183, 1.442695
    %v208 = vpow.pop %v207
    %v209 = vmul.f32 %v184, 1.442695
    %v210 = vpow.pop %v209
    %v211 = vmul.f32 %v185, 1.442695
    %v212 = vpow.pop %v211
    %v213 = vmul.f32 %v186, 1.442695
    %v214 = vpow.pop %v213
    %v215 = vmul.f32 %v187, 1.442695
    %v216 = vpow.pop %v215
    %v217 = vmul.f32 %v188, 1.442695
    %v218 = vpow.pop %v217
    %v219 = vmul.f32 %v189, 1.442695
    %v220 = vpow.pop %v219
    %v221 = vmul.f32 %v190, 1.442695
    %v222 = vpow.pop %v221
    loop: start=0, step=1, limit=20
    $region18: #{tpu_custom_call.1} parent=1 // loop_pre_header
      _
    $region19: #{tpu_custom_call.1} parent=1 // loop_header
      %s224 = sphi 0, %s228
      %p225 = scmp.ge.s32.totalorder %s224, 20
      %v229 = vphi %v192, %v365
      %v230 = vphi %v194, %v366
      %v231 = vphi %v196, %v367
      %v232 = vphi %v198, %v368
      %v233 = vphi %v200, %v369
      %v234 = vphi %v202, %v370
      %v235 = vphi %v204, %v371
      %v236 = vphi %v206, %v372
      %v237 = vphi %v208, %v373
      %v238 = vphi %v210, %v374
      %v239 = vphi %v212, %v375
      %v240 = vphi %v214, %v376
      %v241 = vphi %v216, %v377
      %v242 = vphi %v218, %v378
      %v243 = vphi %v220, %v379
      %v244 = vphi %v222, %v380
    $region20: #{tpu_custom_call.1} parent=1 // loop_header_branch
      %227 = sbr.rel (%p225) target = $region24
    $region21: #{tpu_custom_call.1} parent=1 // loop_body
      %245 = vadd.xlane.f32.xlu0 %v229
      %v246 = vpop.xlane.xlu0 %245
      %247 = vadd.xlane.f32.xlu0 %v230
      %v248 = vpop.xlane.xlu0 %247
      %249 = vadd.xlane.f32.xlu0 %v231
      %v250 = vpop.xlane.xlu0 %249
      %251 = vadd.xlane.f32.xlu0 %v232
      %v252 = vpop.xlane.xlu0 %251
      %253 = vadd.xlane.f32.xlu0 %v233
      %v254 = vpop.xlane.xlu0 %253
      %255 = vadd.xlane.f32.xlu0 %v234
      %v256 = vpop.xlane.xlu0 %255
      %257 = vadd.xlane.f32.xlu0 %v235
      %v258 = vpop.xlane.xlu0 %257
      %259 = vadd.xlane.f32.xlu0 %v236
      %v260 = vpop.xlane.xlu0 %259
      %261 = vadd.xlane.f32.xlu0 %v237
      %v262 = vpop.xlane.xlu0 %261
      %263 = vadd.xlane.f32.xlu0 %v238
      %v264 = vpop.xlane.xlu0 %263
      %265 = vadd.xlane.f32.xlu0 %v239
      %v266 = vpop.xlane.xlu0 %265
      %267 = vadd.xlane.f32.xlu0 %v240
      %v268 = vpop.xlane.xlu0 %267
      %269 = vadd.xlane.f32.xlu0 %v241
      %v270 = vpop.xlane.xlu0 %269
      %271 = vadd.xlane.f32.xlu0 %v242
      %v272 = vpop.xlane.xlu0 %271
      %273 = vadd.xlane.f32.xlu0 %v243
      %v274 = vpop.xlane.xlu0 %273
      %275 = vadd.xlane.f32.xlu0 %v244
      %v276 = vpop.xlane.xlu0 %275
      %vm277 = vcmp.eq.f32.partialorder %v246, 0.0
      %vm278 = vcmp.eq.f32.partialorder %v248, 0.0
      %vm279 = vcmp.eq.f32.partialorder %v250, 0.0
      %vm280 = vcmp.eq.f32.partialorder %v252, 0.0
      %vm281 = vcmp.eq.f32.partialorder %v254, 0.0
      %vm282 = vcmp.eq.f32.partialorder %v256, 0.0
      %vm283 = vcmp.eq.f32.partialorder %v258, 0.0
      %vm284 = vcmp.eq.f32.partialorder %v260, 0.0
      %vm285 = vcmp.eq.f32.partialorder %v262, 0.0
      %vm286 = vcmp.eq.f32.partialorder %v264, 0.0
      %vm287 = vcmp.eq.f32.partialorder %v266, 0.0
      %vm288 = vcmp.eq.f32.partialorder %v268, 0.0
      %vm289 = vcmp.eq.f32.partialorder %v270, 0.0
      %vm290 = vcmp.eq.f32.partialorder %v272, 0.0
      %vm291 = vcmp.eq.f32.partialorder %v274, 0.0
      %vm292 = vcmp.eq.f32.partialorder %v276, 0.0
      %v293 = vsel %vm277, 1.0, %v246
      %v294 = vsel %vm278, 1.0, %v248
      %v295 = vsel %vm279, 1.0, %v250
      %v296 = vsel %vm280, 1.0, %v252
      %v297 = vsel %vm281, 1.0, %v254
      %v298 = vsel %vm282, 1.0, %v256
      %v299 = vsel %vm283, 1.0, %v258
      %v300 = vsel %vm284, 1.0, %v260
      %v301 = vsel %vm285, 1.0, %v262
      %v302 = vsel %vm286, 1.0, %v264
      %v303 = vsel %vm287, 1.0, %v266
      %v304 = vsel %vm288, 1.0, %v268
      %v305 = vsel %vm289, 1.0, %v270
      %v306 = vsel %vm290, 1.0, %v272
      %v307 = vsel %vm291, 1.0, %v274
      %v308 = vsel %vm292, 1.0, %v276
      %v309 = vrcp.pop %v293
      %v310 = vrcp.pop %v294
      %v311 = vrcp.pop %v295
      %v312 = vrcp.pop %v296
      %v313 = vrcp.pop %v297
      %v314 = vrcp.pop %v298
      %v315 = vrcp.pop %v299
      %v316 = vrcp.pop %v300
      %v317 = vrcp.pop %v301
      %v318 = vrcp.pop %v302
      %v319 = vrcp.pop %v303
      %v320 = vrcp.pop %v304
      %v321 = vrcp.pop %v305
      %v322 = vrcp.pop %v306
      %v323 = vrcp.pop %v307
      %v324 = vrcp.pop %v308
      %v325 = vmul.f32 %v229, %v309
      %v326 = vmul.f32 %v230, %v310
      %v327 = vmul.f32 %v231, %v311
      %v328 = vmul.f32 %v232, %v312
      %v329 = vmul.f32 %v233, %v313
      %v330 = vmul.f32 %v234, %v314
      %v331 = vmul.f32 %v235, %v315
      %v332 = vmul.f32 %v236, %v316
      %v333 = vmul.f32 %v237, %v317
      %v334 = vmul.f32 %v238, %v318
      %v335 = vmul.f32 %v239, %v319
      %v336 = vmul.f32 %v240, %v320
      %v337 = vmul.f32 %v241, %v321
      %v338 = vmul.f32 %v242, %v322
      %v339 = vmul.f32 %v243, %v323
      %v340 = vmul.f32 %v244, %v324
      %v341 = vadd.f32 %v325, %v326
      %v342 = vadd.f32 %v341, %v327
      %v343 = vadd.f32 %v342, %v328
      %v344 = vadd.f32 %v343, %v329
      %v345 = vadd.f32 %v344, %v330
      %v346 = vadd.f32 %v345, %v331
      %v347 = vadd.f32 %v346, %v332
      %v348 = vadd.f32 %v347, %v333
      %v349 = vadd.f32 %v348, %v334
      %v350 = vadd.f32 %v349, %v335
      %v351 = vadd.f32 %v350, %v336
      %v352 = vadd.f32 %v351, %v337
      %v353 = vadd.f32 %v352, %v338
      %v354 = vadd.f32 %v353, %v339
      %v355 = vadd.f32 %v354, %v340
      %v356 = vrot.slane %v355, 4
      %v357 = vadd.f32 %v355, %v356
      %v358 = vrot.slane %v357, 2
      %v359 = vadd.f32 %v357, %v358
      %v360 = vrot.slane %v359, 1
      %v361 = vadd.f32 %v359, %v360
      %vm362 = vcmp.eq.f32.partialorder %v361, 0.0
      %v363 = vsel %vm362, 1.0, %v361
      %v364 = vrcp.pop %v363
      %v365 = vmul.f32 %v325, %v364
      %v366 = vmul.f32 %v326, %v364
      %v367 = vmul.f32 %v327, %v364
      %v368 = vmul.f32 %v328, %v364
      %v369 = vmul.f32 %v329, %v364
      %v370 = vmul.f32 %v330, %v364
      %v371 = vmul.f32 %v331, %v364
      %v372 = vmul.f32 %v332, %v364
      %v373 = vmul.f32 %v333, %v364
      %v374 = vmul.f32 %v334, %v364
      %v375 = vmul.f32 %v335, %v364
      %v376 = vmul.f32 %v336, %v364
      %v377 = vmul.f32 %v337, %v364
      %v378 = vmul.f32 %v338, %v364
      %v379 = vmul.f32 %v339, %v364
      %v380 = vmul.f32 %v340, %v364
    $region22: #{tpu_custom_call.1} parent=1 // loop_footer
      %s228 = sadd.s32 1, %s224
    $region23: #{tpu_custom_call.1} parent=1 // loop_footer_branch
      %223 = sbr.rel target = $region19
    $region24: #{tpu_custom_call.1} parent=1 // loop_exit
      _
    %vm381 = vcmp.le.s32.totalorder %v51, %v68
    %vm382 = vcmp.le.s32.totalorder %v52, %v68
    %vm383 = vcmp.le.s32.totalorder %v53, %v68
    %vm384 = vcmp.le.s32.totalorder %v54, %v68
    %vm385 = vcmp.le.s32.totalorder %v55, %v68
    %vm386 = vcmp.le.s32.totalorder %v56, %v68
    %vm387 = vcmp.le.s32.totalorder %v57, %v68
    %vm388 = vcmp.le.s32.totalorder %v58, %v68
    %vm389 = vcmp.le.s32.totalorder %v59, %v68
    %vm390 = vcmp.le.s32.totalorder %v60, %v68
    %vm391 = vcmp.le.s32.totalorder %v61, %v68
    %vm392 = vcmp.le.s32.totalorder %v62, %v68
    %vm393 = vcmp.le.s32.totalorder %v63, %v68
    %vm394 = vcmp.le.s32.totalorder %v64, %v68
    %vm395 = vcmp.le.s32.totalorder %v65, %v68
    %vm396 = vcmp.le.s32.totalorder %v66, %v68
    %v397 = vsel %vm381, 1, 0
    %v398 = vsel %vm382, 1, 0
    %v399 = vsel %vm383, 1, 0
    %v400 = vsel %vm384, 1, 0
    %v401 = vsel %vm385, 1, 0
    %v402 = vsel %vm386, 1, 0
    %v403 = vsel %vm387, 1, 0
    %v404 = vsel %vm388, 1, 0
    %v405 = vsel %vm389, 1, 0
    %v406 = vsel %vm390, 1, 0
    %v407 = vsel %vm391, 1, 0
    %v408 = vsel %vm392, 1, 0
    %v409 = vsel %vm393, 1, 0
    %v410 = vsel %vm394, 1, 0
    %v411 = vsel %vm395, 1, 0
    %v412 = vsel %vm396, 1, 0
    %v413 = vcvt.s32.f32 %v397
    %v414 = vcvt.s32.f32 %v398
    %v415 = vcvt.s32.f32 %v399
    %v416 = vcvt.s32.f32 %v400
    %v417 = vcvt.s32.f32 %v401
    %v418 = vcvt.s32.f32 %v402
    %v419 = vcvt.s32.f32 %v403
    %v420 = vcvt.s32.f32 %v404
    %v421 = vcvt.s32.f32 %v405
    %v422 = vcvt.s32.f32 %v406
    %v423 = vcvt.s32.f32 %v407
    %v424 = vcvt.s32.f32 %v408
    %v425 = vcvt.s32.f32 %v409
    %v426 = vcvt.s32.f32 %v410
    %v427 = vcvt.s32.f32 %v411
    %v428 = vcvt.s32.f32 %v412
    %429 = vmatpush.msra.mxu0 %v428
    %430 = vmatpush.msra.mxu0 %v427
    %431 = vmatpush.msra.mxu0 %v426
    %432 = vmatpush.msra.mxu0 %v425
    %433 = vmatpush.msra.mxu0 %v424
    %434 = vmatpush.msra.mxu0 %v423
    %435 = vmatpush.msra.mxu0 %v422
    %436 = vmatpush.msra.mxu0 %v421
    %437 = vmatpush.msra.mxu0 %v420
    %438 = vmatpush.msra.mxu0 %v419
    %439 = vmatpush.msra.mxu0 %v418
    %440 = vmatpush.msra.mxu0 %v417
    %441 = vmatpush.msra.mxu0 %v416
    %442 = vmatpush.msra.mxu0 %v415
    %443 = vmatpush.msra.mxu0 %v414
    %444 = vmatpush.msra.mxu0 %v413
    %445 = vmatmul.f32.gmra.mxu0 %v229
    %v446 = vpop.f32.mrf.mxu0
    %v447 = vadd.f32 0.0, %v446
    %448 = vmatmul.f32.gmra.mxu0 %v230
    %v449 = vpop.f32.mrf.mxu0
    %v450 = vadd.f32 0.0, %v449
    %451 = vmatmul.f32.gmra.mxu0 %v231
    %v452 = vpop.f32.mrf.mxu0
    %v453 = vadd.f32 0.0, %v452
    %454 = vmatmul.f32.gmra.mxu0 %v232
    %v455 = vpop.f32.mrf.mxu0
    %v456 = vadd.f32 0.0, %v455
    %457 = vmatmul.f32.gmra.mxu0 %v233
    %v458 = vpop.f32.mrf.mxu0
    %v459 = vadd.f32 0.0, %v458
    %460 = vmatmul.f32.gmra.mxu0 %v234
    %v461 = vpop.f32.mrf.mxu0
    %v462 = vadd.f32 0.0, %v461
    %463 = vmatmul.f32.gmra.mxu0 %v235
    %v464 = vpop.f32.mrf.mxu0
    %v465 = vadd.f32 0.0, %v464
    %466 = vmatmul.f32.gmra.mxu0 %v236
    %v467 = vpop.f32.mrf.mxu0
    %v468 = vadd.f32 0.0, %v467
    %469 = vmatmul.f32.gmra.mxu0 %v237
    %v470 = vpop.f32.mrf.mxu0
    %v471 = vadd.f32 0.0, %v470
    %472 = vmatmul.f32.gmra.mxu0 %v238
    %v473 = vpop.f32.mrf.mxu0
    %v474 = vadd.f32 0.0, %v473
    %475 = vmatmul.f32.gmra.mxu0 %v239
    %v476 = vpop.f32.mrf.mxu0
    %v477 = vadd.f32 0.0, %v476
    %478 = vmatmul.f32.gmra.mxu0 %v240
    %v479 = vpop.f32.mrf.mxu0
    %v480 = vadd.f32 0.0, %v479
    %481 = vmatmul.f32.gmra.mxu0 %v241
    %v482 = vpop.f32.mrf.mxu0
    %v483 = vadd.f32 0.0, %v482
    %484 = vmatmul.f32.gmra.mxu0 %v242
    %v485 = vpop.f32.mrf.mxu0
    %v486 = vadd.f32 0.0, %v485
    %487 = vmatmul.f32.gmra.mxu0 %v243
    %v488 = vpop.f32.mrf.mxu0
    %v489 = vadd.f32 0.0, %v488
    %490 = vmatmul.f32.gmra.mxu0 %v244
    %v491 = vpop.f32.mrf.mxu0
    %v492 = vadd.f32 0.0, %v491
    %493 = vdwg.mxu0
    %494 = vmatpush.xpose.msra.mxu0 %v244
    %495 = vmatpush.xpose.msra.mxu0 %v243
    %496 = vmatpush.xpose.msra.mxu0 %v242
    %497 = vmatpush.xpose.msra.mxu0 %v241
    %498 = vmatpush.xpose.msra.mxu0 %v240
    %499 = vmatpush.xpose.msra.mxu0 %v239
    %500 = vmatpush.xpose.msra.mxu0 %v238
    %501 = vmatpush.xpose.msra.mxu0 %v237
    %502 = vmatpush.xpose.msra.mxu0 %v236
    %503 = vmatpush.xpose.msra.mxu0 %v235
    %504 = vmatpush.xpose.msra.mxu0 %v234
    %505 = vmatpush.xpose.msra.mxu0 %v233
    %506 = vmatpush.xpose.msra.mxu0 %v232
    %507 = vmatpush.xpose.msra.mxu0 %v231
    %508 = vmatpush.xpose.msra.mxu0 %v230
    %509 = vmatpush.xpose.msra.mxu0 %v229
    %510 = vmatmul.f32.gmra.mxu0 %v447
    %v511 = vpop.f32.mrf.mxu0
    %v512 = vadd.f32 0.0, %v511
    %513 = vmatmul.f32.gmra.mxu0 %v450
    %v514 = vpop.f32.mrf.mxu0
    %v515 = vadd.f32 0.0, %v514
    %516 = vmatmul.f32.gmra.mxu0 %v453
    %v517 = vpop.f32.mrf.mxu0
    %v518 = vadd.f32 0.0, %v517
    %519 = vmatmul.f32.gmra.mxu0 %v456
    %v520 = vpop.f32.mrf.mxu0
    %v521 = vadd.f32 0.0, %v520
    %522 = vmatmul.f32.gmra.mxu0 %v459
    %v523 = vpop.f32.mrf.mxu0
    %v524 = vadd.f32 0.0, %v523
    %525 = vmatmul.f32.gmra.mxu0 %v462
    %v526 = vpop.f32.mrf.mxu0
    %v527 = vadd.f32 0.0, %v526
    %528 = vmatmul.f32.gmra.mxu0 %v465
    %v529 = vpop.f32.mrf.mxu0
    %v530 = vadd.f32 0.0, %v529
    %531 = vmatmul.f32.gmra.mxu0 %v468
    %v532 = vpop.f32.mrf.mxu0
    %v533 = vadd.f32 0.0, %v532
    %534 = vmatmul.f32.gmra.mxu0 %v471
    %v535 = vpop.f32.mrf.mxu0
    %v536 = vadd.f32 0.0, %v535
    %537 = vmatmul.f32.gmra.mxu0 %v474
    %v538 = vpop.f32.mrf.mxu0
    %v539 = vadd.f32 0.0, %v538
    %540 = vmatmul.f32.gmra.mxu0 %v477
    %v541 = vpop.f32.mrf.mxu0
    %v542 = vadd.f32 0.0, %v541
    %543 = vmatmul.f32.gmra.mxu0 %v480
    %v544 = vpop.f32.mrf.mxu0
    %v545 = vadd.f32 0.0, %v544
    %546 = vmatmul.f32.gmra.mxu0 %v483
    %v547 = vpop.f32.mrf.mxu0
    %v548 = vadd.f32 0.0, %v547
    %549 = vmatmul.f32.gmra.mxu0 %v486
    %v550 = vpop.f32.mrf.mxu0
    %v551 = vadd.f32 0.0, %v550
    %552 = vmatmul.f32.gmra.mxu0 %v489
    %v553 = vpop.f32.mrf.mxu0
    %v554 = vadd.f32 0.0, %v553
    %555 = vmatmul.f32.gmra.mxu0 %v492
    %v556 = vpop.f32.mrf.mxu0
    %v557 = vadd.f32 0.0, %v556
    %558 = vdwg.mxu0
    %559 = vst [vmem:[#allocation7] sm:$0xff] %v512
    %560 = vst [vmem:[#allocation7 + $0x8] sm:$0xff] %v515
    %561 = vst [vmem:[#allocation7 + $0x10] sm:$0xff] %v518
    %562 = vst [vmem:[#allocation7 + $0x18] sm:$0xff] %v521
    %563 = vst [vmem:[#allocation7 + $0x20] sm:$0xff] %v524
    %564 = vst [vmem:[#allocation7 + $0x28] sm:$0xff] %v527
    %565 = vst [vmem:[#allocation7 + $0x30] sm:$0xff] %v530
    %566 = vst [vmem:[#allocation7 + $0x38] sm:$0xff] %v533
    %567 = vst [vmem:[#allocation7 + $0x40] sm:$0xff] %v536
    %568 = vst [vmem:[#allocation7 + $0x48] sm:$0xff] %v539
    %569 = vst [vmem:[#allocation7 + $0x50] sm:$0xff] %v542
    %570 = vst [vmem:[#allocation7 + $0x58] sm:$0xff] %v545
    %571 = vst [vmem:[#allocation7 + $0x60] sm:$0xff] %v548
    %572 = vst [vmem:[#allocation7 + $0x68] sm:$0xff] %v551
    %573 = vst [vmem:[#allocation7 + $0x70] sm:$0xff] %v554
    %574 = vst [vmem:[#allocation7 + $0x78] sm:$0xff] %v557
    %v575 = vld [vmem:[#allocation5] sm:$0xff]
    %v576 = vld [vmem:[#allocation5 + $0x8] sm:$0xff]
    %v577 = vld [vmem:[#allocation5 + $0x10] sm:$0xff]
    %v578 = vld [vmem:[#allocation5 + $0x18] sm:$0xff]
    %v579 = vld [vmem:[#allocation5 + $0x20] sm:$0xff]
    %v580 = vld [vmem:[#allocation5 + $0x28] sm:$0xff]
    %v581 = vld [vmem:[#allocation5 + $0x30] sm:$0xff]
    %v582 = vld [vmem:[#allocation5 + $0x38] sm:$0xff]
    %v583 = vld [vmem:[#allocation5 + $0x40] sm:$0xff]
    %v584 = vld [vmem:[#allocation5 + $0x48] sm:$0xff]
    %v585 = vld [vmem:[#allocation5 + $0x50] sm:$0xff]
    %v586 = vld [vmem:[#allocation5 + $0x58] sm:$0xff]
    %v587 = vld [vmem:[#allocation5 + $0x60] sm:$0xff]
    %v588 = vld [vmem:[#allocation5 + $0x68] sm:$0xff]
    %v589 = vld [vmem:[#allocation5 + $0x70] sm:$0xff]
    %v590 = vld [vmem:[#allocation5 + $0x78] sm:$0xff]
    %v591 = vmul.f32 %v575, %v512
    %v592 = vmul.f32 %v576, %v515
    %v593 = vmul.f32 %v577, %v518
    %v594 = vmul.f32 %v578, %v521
    %v595 = vmul.f32 %v579, %v524
    %v596 = vmul.f32 %v580, %v527
    %v597 = vmul.f32 %v581, %v530
    %v598 = vmul.f32 %v582, %v533
    %v599 = vmul.f32 %v583, %v536
    %v600 = vmul.f32 %v584, %v539
    %v601 = vmul.f32 %v585, %v542
    %v602 = vmul.f32 %v586, %v545
    %v603 = vmul.f32 %v587, %v548
    %v604 = vmul.f32 %v588, %v551
    %v605 = vmul.f32 %v589, %v554
    %v606 = vmul.f32 %v590, %v557
    %v607 = vpack.c.bf16 %v591, %v591
    %v608 = vpack.c.bf16 %v592, %v592
    %v609 = vpack.c.bf16 %v593, %v593
    %v610 = vpack.c.bf16 %v594, %v594
    %v611 = vpack.c.bf16 %v595, %v595
    %v612 = vpack.c.bf16 %v596, %v596
    %v613 = vpack.c.bf16 %v597, %v597
    %v614 = vpack.c.bf16 %v598, %v598
    %v615 = vpack.c.bf16 %v599, %v599
    %v616 = vpack.c.bf16 %v600, %v600
    %v617 = vpack.c.bf16 %v601, %v601
    %v618 = vpack.c.bf16 %v602, %v602
    %v619 = vpack.c.bf16 %v603, %v603
    %v620 = vpack.c.bf16 %v604, %v604
    %v621 = vpack.c.bf16 %v605, %v605
    %v622 = vpack.c.bf16 %v606, %v606
    %623 = vst [vmem:[#allocation8] sm:$0xf] %v607
    %624 = vst [vmem:[#allocation8 + $0xc] sm:$0xf] %v608
    %625 = vst [vmem:[#allocation8 + $0x18] sm:$0xf] %v609
    %626 = vst [vmem:[#allocation8 + $0x24] sm:$0xf] %v610
    %627 = vst [vmem:[#allocation8 + $0x30] sm:$0xf] %v611
    %628 = vst [vmem:[#allocation8 + $0x3c] sm:$0xf] %v612
    %629 = vst [vmem:[#allocation8 + $0x48] sm:$0xf] %v613
    %630 = vst [vmem:[#allocation8 + $0x54] sm:$0xf] %v614
    %631 = vst [vmem:[#allocation8 + $0x60] sm:$0xf] %v615
    %632 = vst [vmem:[#allocation8 + $0x6c] sm:$0xf] %v616
    %633 = vst [vmem:[#allocation8 + $0x78] sm:$0xf] %v617
    %634 = vst [vmem:[#allocation8 + $0x84] sm:$0xf] %v618
    %635 = vst [vmem:[#allocation8 + $0x90] sm:$0xf] %v619
    %636 = vst [vmem:[#allocation8 + $0x9c] sm:$0xf] %v620
    %637 = vst [vmem:[#allocation8 + $0xa8] sm:$0xf] %v621
    %638 = vst [vmem:[#allocation8 + $0xb4] sm:$0xf] %v622
    %s639 = scalar_lea.vmem [#allocation5], 128
    %v640 = vld [vmem:[%s639] sm:$0xff]
    %v641 = vld [vmem:[%s639 + $0x8] sm:$0xff]
    %v642 = vld [vmem:[%s639 + $0x10] sm:$0xff]
    %v643 = vld [vmem:[%s639 + $0x18] sm:$0xff]
    %v644 = vld [vmem:[%s639 + $0x20] sm:$0xff]
    %v645 = vld [vmem:[%s639 + $0x28] sm:$0xff]
    %v646 = vld [vmem:[%s639 + $0x30] sm:$0xff]
    %v647 = vld [vmem:[%s639 + $0x38] sm:$0xff]
    %v648 = vld [vmem:[%s639 + $0x40] sm:$0xff]
    %v649 = vld [vmem:[%s639 + $0x48] sm:$0xff]
    %v650 = vld [vmem:[%s639 + $0x50] sm:$0xff]
    %v651 = vld [vmem:[%s639 + $0x58] sm:$0xff]
    %v652 = vld [vmem:[%s639 + $0x60] sm:$0xff]
    %v653 = vld [vmem:[%s639 + $0x68] sm:$0xff]
    %v654 = vld [vmem:[%s639 + $0x70] sm:$0xff]
    %v655 = vld [vmem:[%s639 + $0x78] sm:$0xff]
    %v656 = vmul.f32 %v640, %v512
    %v657 = vmul.f32 %v641, %v515
    %v658 = vmul.f32 %v642, %v518
    %v659 = vmul.f32 %v643, %v521
    %v660 = vmul.f32 %v644, %v524
    %v661 = vmul.f32 %v645, %v527
    %v662 = vmul.f32 %v646, %v530
    %v663 = vmul.f32 %v647, %v533
    %v664 = vmul.f32 %v648, %v536
    %v665 = vmul.f32 %v649, %v539
    %v666 = vmul.f32 %v650, %v542
    %v667 = vmul.f32 %v651, %v545
    %v668 = vmul.f32 %v652, %v548
    %v669 = vmul.f32 %v653, %v551
    %v670 = vmul.f32 %v654, %v554
    %v671 = vmul.f32 %v655, %v557
    %v672 = vpack.c.bf16 %v656, %v656
    %v673 = vpack.c.bf16 %v657, %v657
    %v674 = vpack.c.bf16 %v658, %v658
    %v675 = vpack.c.bf16 %v659, %v659
    %v676 = vpack.c.bf16 %v660, %v660
    %v677 = vpack.c.bf16 %v661, %v661
    %v678 = vpack.c.bf16 %v662, %v662
    %v679 = vpack.c.bf16 %v663, %v663
    %v680 = vpack.c.bf16 %v664, %v664
    %v681 = vpack.c.bf16 %v665, %v665
    %v682 = vpack.c.bf16 %v666, %v666
    %v683 = vpack.c.bf16 %v667, %v667
    %v684 = vpack.c.bf16 %v668, %v668
    %v685 = vpack.c.bf16 %v669, %v669
    %v686 = vpack.c.bf16 %v670, %v670
    %v687 = vpack.c.bf16 %v671, %v671
    %688 = vst [vmem:[#allocation8 + $0x4] sm:$0xf] %v672
    %689 = vst [vmem:[#allocation8 + $0x10] sm:$0xf] %v673
    %690 = vst [vmem:[#allocation8 + $0x1c] sm:$0xf] %v674
    %691 = vst [vmem:[#allocation8 + $0x28] sm:$0xf] %v675
    %692 = vst [vmem:[#allocation8 + $0x34] sm:$0xf] %v676
    %693 = vst [vmem:[#allocation8 + $0x40] sm:$0xf] %v677
    %694 = vst [vmem:[#allocation8 + $0x4c] sm:$0xf] %v678
    %695 = vst [vmem:[#allocation8 + $0x58] sm:$0xf] %v679
    %696 = vst [vmem:[#allocation8 + $0x64] sm:$0xf] %v680
    %697 = vst [vmem:[#allocation8 + $0x70] sm:$0xf] %v681
    %698 = vst [vmem:[#allocation8 + $0x7c] sm:$0xf] %v682
    %699 = vst [vmem:[#allocation8 + $0x88] sm:$0xf] %v683
    %700 = vst [vmem:[#allocation8 + $0x94] sm:$0xf] %v684
    %701 = vst [vmem:[#allocation8 + $0xa0] sm:$0xf] %v685
    %702 = vst [vmem:[#allocation8 + $0xac] sm:$0xf] %v686
    %703 = vst [vmem:[#allocation8 + $0xb8] sm:$0xf] %v687
    %s704 = scalar_lea.vmem [#allocation5], 256
    %v705 = vld [vmem:[%s704] sm:$0xff]
    %v706 = vld [vmem:[%s704 + $0x8] sm:$0xff]
    %v707 = vld [vmem:[%s704 + $0x10] sm:$0xff]
    %v708 = vld [vmem:[%s704 + $0x18] sm:$0xff]
    %v709 = vld [vmem:[%s704 + $0x20] sm:$0xff]
    %v710 = vld [vmem:[%s704 + $0x28] sm:$0xff]
    %v711 = vld [vmem:[%s704 + $0x30] sm:$0xff]
    %v712 = vld [vmem:[%s704 + $0x38] sm:$0xff]
    %v713 = vld [vmem:[%s704 + $0x40] sm:$0xff]
    %v714 = vld [vmem:[%s704 + $0x48] sm:$0xff]
    %v715 = vld [vmem:[%s704 + $0x50] sm:$0xff]
    %v716 = vld [vmem:[%s704 + $0x58] sm:$0xff]
    %v717 = vld [vmem:[%s704 + $0x60] sm:$0xff]
    %v718 = vld [vmem:[%s704 + $0x68] sm:$0xff]
    %v719 = vld [vmem:[%s704 + $0x70] sm:$0xff]
    %v720 = vld [vmem:[%s704 + $0x78] sm:$0xff]
    %v721 = vmul.f32 %v705, %v512
    %v722 = vmul.f32 %v706, %v515
    %v723 = vmul.f32 %v707, %v518
    %v724 = vmul.f32 %v708, %v521
    %v725 = vmul.f32 %v709, %v524
    %v726 = vmul.f32 %v710, %v527
    %v727 = vmul.f32 %v711, %v530
    %v728 = vmul.f32 %v712, %v533
    %v729 = vmul.f32 %v713, %v536
    %v730 = vmul.f32 %v714, %v539
    %v731 = vmul.f32 %v715, %v542
    %v732 = vmul.f32 %v716, %v545
    %v733 = vmul.f32 %v717, %v548
    %v734 = vmul.f32 %v718, %v551
    %v735 = vmul.f32 %v719, %v554
    %v736 = vmul.f32 %v720, %v557
    %v737 = vpack.c.bf16 %v721, %v721
    %v738 = vpack.c.bf16 %v722, %v722
    %v739 = vpack.c.bf16 %v723, %v723
    %v740 = vpack.c.bf16 %v724, %v724
    %v741 = vpack.c.bf16 %v725, %v725
    %v742 = vpack.c.bf16 %v726, %v726
    %v743 = vpack.c.bf16 %v727, %v727
    %v744 = vpack.c.bf16 %v728, %v728
    %v745 = vpack.c.bf16 %v729, %v729
    %v746 = vpack.c.bf16 %v730, %v730
    %v747 = vpack.c.bf16 %v731, %v731
    %v748 = vpack.c.bf16 %v732, %v732
    %v749 = vpack.c.bf16 %v733, %v733
    %v750 = vpack.c.bf16 %v734, %v734
    %v751 = vpack.c.bf16 %v735, %v735
    %v752 = vpack.c.bf16 %v736, %v736
    %753 = vst [vmem:[#allocation8 + $0x8] sm:$0xf] %v737
    %754 = vst [vmem:[#allocation8 + $0x14] sm:$0xf] %v738
    %755 = vst [vmem:[#allocation8 + $0x20] sm:$0xf] %v739
    %756 = vst [vmem:[#allocation8 + $0x2c] sm:$0xf] %v740
    %757 = vst [vmem:[#allocation8 + $0x38] sm:$0xf] %v741
    %758 = vst [vmem:[#allocation8 + $0x44] sm:$0xf] %v742
    %759 = vst [vmem:[#allocation8 + $0x50] sm:$0xf] %v743
    %760 = vst [vmem:[#allocation8 + $0x5c] sm:$0xf] %v744
    %761 = vst [vmem:[#allocation8 + $0x68] sm:$0xf] %v745
    %762 = vst [vmem:[#allocation8 + $0x74] sm:$0xf] %v746
    %763 = vst [vmem:[#allocation8 + $0x80] sm:$0xf] %v747
    %764 = vst [vmem:[#allocation8 + $0x8c] sm:$0xf] %v748
    %765 = vst [vmem:[#allocation8 + $0x98] sm:$0xf] %v749
    %766 = vst [vmem:[#allocation8 + $0xa4] sm:$0xf] %v750
    %767 = vst [vmem:[#allocation8 + $0xb0] sm:$0xf] %v751
    %768 = vst [vmem:[#allocation8 + $0xbc] sm:$0xf] %v752
    %s769 = scalar_lea.vmem [#allocation5], 384
    %v770 = vld [vmem:[%s769] sm:$0xff]
    %v771 = vld [vmem:[%s769 + $0x8] sm:$0xff]
    %v772 = vld [vmem:[%s769 + $0x10] sm:$0xff]
    %v773 = vld [vmem:[%s769 + $0x18] sm:$0xff]
    %v774 = vld [vmem:[%s769 + $0x20] sm:$0xff]
    %v775 = vld [vmem:[%s769 + $0x28] sm:$0xff]
    %v776 = vld [vmem:[%s769 + $0x30] sm:$0xff]
    %v777 = vld [vmem:[%s769 + $0x38] sm:$0xff]
    %v778 = vld [vmem:[%s769 + $0x40] sm:$0xff]
    %v779 = vld [vmem:[%s769 + $0x48] sm:$0xff]
    %v780 = vld [vmem:[%s769 + $0x50] sm:$0xff]
    %v781 = vld [vmem:[%s769 + $0x58] sm:$0xff]
    %v782 = vld [vmem:[%s769 + $0x60] sm:$0xff]
    %v783 = vld [vmem:[%s769 + $0x68] sm:$0xff]
    %v784 = vld [vmem:[%s769 + $0x70] sm:$0xff]
    %v785 = vld [vmem:[%s769 + $0x78] sm:$0xff]
    %v786 = vmul.f32 %v770, %v512
    %v787 = vmul.f32 %v771, %v515
    %v788 = vmul.f32 %v772, %v518
    %v789 = vmul.f32 %v773, %v521
    %v790 = vmul.f32 %v774, %v524
    %v791 = vmul.f32 %v775, %v527
    %v792 = vmul.f32 %v776, %v530
    %v793 = vmul.f32 %v777, %v533
    %v794 = vmul.f32 %v778, %v536
    %v795 = vmul.f32 %v779, %v539
    %v796 = vmul.f32 %v780, %v542
    %v797 = vmul.f32 %v781, %v545
    %v798 = vmul.f32 %v782, %v548
    %v799 = vmul.f32 %v783, %v551
    %v800 = vmul.f32 %v784, %v554
    %v801 = vmul.f32 %v785, %v557
    %v802 = vpack.c.bf16 %v786, %v786
    %v803 = vpack.c.bf16 %v787, %v787
    %v804 = vpack.c.bf16 %v788, %v788
    %v805 = vpack.c.bf16 %v789, %v789
    %v806 = vpack.c.bf16 %v790, %v790
    %v807 = vpack.c.bf16 %v791, %v791
    %v808 = vpack.c.bf16 %v792, %v792
    %v809 = vpack.c.bf16 %v793, %v793
    %v810 = vpack.c.bf16 %v794, %v794
    %v811 = vpack.c.bf16 %v795, %v795
    %v812 = vpack.c.bf16 %v796, %v796
    %v813 = vpack.c.bf16 %v797, %v797
    %v814 = vpack.c.bf16 %v798, %v798
    %v815 = vpack.c.bf16 %v799, %v799
    %v816 = vpack.c.bf16 %v800, %v800
    %v817 = vpack.c.bf16 %v801, %v801
    %818 = vst [vmem:[#allocation10] sm:$0xf] %v802
    %819 = vst [vmem:[#allocation10 + $0x8] sm:$0xf] %v803
    %820 = vst [vmem:[#allocation10 + $0x10] sm:$0xf] %v804
    %821 = vst [vmem:[#allocation10 + $0x18] sm:$0xf] %v805
    %822 = vst [vmem:[#allocation10 + $0x20] sm:$0xf] %v806
    %823 = vst [vmem:[#allocation10 + $0x28] sm:$0xf] %v807
    %824 = vst [vmem:[#allocation10 + $0x30] sm:$0xf] %v808
    %825 = vst [vmem:[#allocation10 + $0x38] sm:$0xf] %v809
    %826 = vst [vmem:[#allocation10 + $0x40] sm:$0xf] %v810
    %827 = vst [vmem:[#allocation10 + $0x48] sm:$0xf] %v811
    %828 = vst [vmem:[#allocation10 + $0x50] sm:$0xf] %v812
    %829 = vst [vmem:[#allocation10 + $0x58] sm:$0xf] %v813
    %830 = vst [vmem:[#allocation10 + $0x60] sm:$0xf] %v814
    %831 = vst [vmem:[#allocation10 + $0x68] sm:$0xf] %v815
    %832 = vst [vmem:[#allocation10 + $0x70] sm:$0xf] %v816
    %833 = vst [vmem:[#allocation10 + $0x78] sm:$0xf] %v817
    %s834 = scalar_lea.vmem [#allocation5], 512
    %v835 = vld [vmem:[%s834] sm:$0xff]
    %v836 = vld [vmem:[%s834 + $0x8] sm:$0xff]
    %v837 = vld [vmem:[%s834 + $0x10] sm:$0xff]
    %v838 = vld [vmem:[%s834 + $0x18] sm:$0xff]
    %v839 = vld [vmem:[%s834 + $0x20] sm:$0xff]
    %v840 = vld [vmem:[%s834 + $0x28] sm:$0xff]
    %v841 = vld [vmem:[%s834 + $0x30] sm:$0xff]
    %v842 = vld [vmem:[%s834 + $0x38] sm:$0xff]
    %v843 = vld [vmem:[%s834 + $0x40] sm:$0xff]
    %v844 = vld [vmem:[%s834 + $0x48] sm:$0xff]
    %v845 = vld [vmem:[%s834 + $0x50] sm:$0xff]
    %v846 = vld [vmem:[%s834 + $0x58] sm:$0xff]
    %v847 = vld [vmem:[%s834 + $0x60] sm:$0xff]
    %v848 = vld [vmem:[%s834 + $0x68] sm:$0xff]
    %v849 = vld [vmem:[%s834 + $0x70] sm:$0xff]
    %v850 = vld [vmem:[%s834 + $0x78] sm:$0xff]
    %v851 = vmul.f32 %v835, %v512
    %v852 = vmul.f32 %v836, %v515
    %v853 = vmul.f32 %v837, %v518
    %v854 = vmul.f32 %v838, %v521
    %v855 = vmul.f32 %v839, %v524
    %v856 = vmul.f32 %v840, %v527
    %v857 = vmul.f32 %v841, %v530
    %v858 = vmul.f32 %v842, %v533
    %v859 = vmul.f32 %v843, %v536
    %v860 = vmul.f32 %v844, %v539
    %v861 = vmul.f32 %v845, %v542
    %v862 = vmul.f32 %v846, %v545
    %v863 = vmul.f32 %v847, %v548
    %v864 = vmul.f32 %v848, %v551
    %v865 = vmul.f32 %v849, %v554
    %v866 = vmul.f32 %v850, %v557
    %v867 = vpack.c.bf16 %v851, %v851
    %v868 = vpack.c.bf16 %v852, %v852
    %v869 = vpack.c.bf16 %v853, %v853
    %v870 = vpack.c.bf16 %v854, %v854
    %v871 = vpack.c.bf16 %v855, %v855
    %v872 = vpack.c.bf16 %v856, %v856
    %v873 = vpack.c.bf16 %v857, %v857
    %v874 = vpack.c.bf16 %v858, %v858
    %v875 = vpack.c.bf16 %v859, %v859
    %v876 = vpack.c.bf16 %v860, %v860
    %v877 = vpack.c.bf16 %v861, %v861
    %v878 = vpack.c.bf16 %v862, %v862
    %v879 = vpack.c.bf16 %v863, %v863
    %v880 = vpack.c.bf16 %v864, %v864
    %v881 = vpack.c.bf16 %v865, %v865
    %v882 = vpack.c.bf16 %v866, %v866
    %883 = vst [vmem:[#allocation10 + $0x4] sm:$0xf] %v867
    %884 = vst [vmem:[#allocation10 + $0xc] sm:$0xf] %v868
    %885 = vst [vmem:[#allocation10 + $0x14] sm:$0xf] %v869
    %886 = vst [vmem:[#allocation10 + $0x1c] sm:$0xf] %v870
    %887 = vst [vmem:[#allocation10 + $0x24] sm:$0xf] %v871
    %888 = vst [vmem:[#allocation10 + $0x2c] sm:$0xf] %v872
    %889 = vst [vmem:[#allocation10 + $0x34] sm:$0xf] %v873
    %890 = vst [vmem:[#allocation10 + $0x3c] sm:$0xf] %v874
    %891 = vst [vmem:[#allocation10 + $0x44] sm:$0xf] %v875
    %892 = vst [vmem:[#allocation10 + $0x4c] sm:$0xf] %v876
    %893 = vst [vmem:[#allocation10 + $0x54] sm:$0xf] %v877
    %894 = vst [vmem:[#allocation10 + $0x5c] sm:$0xf] %v878
    %895 = vst [vmem:[#allocation10 + $0x64] sm:$0xf] %v879
    %896 = vst [vmem:[#allocation10 + $0x6c] sm:$0xf] %v880
    %897 = vst [vmem:[#allocation10 + $0x74] sm:$0xf] %v881
    %898 = vst [vmem:[#allocation10 + $0x7c] sm:$0xf] %v882
    %s899 = scalar_lea.vmem [#allocation5], 640
    %v900 = vld [vmem:[%s899] sm:$0xff]
    %v901 = vld [vmem:[%s899 + $0x8] sm:$0xff]
    %v902 = vld [vmem:[%s899 + $0x10] sm:$0xff]
    %v903 = vld [vmem:[%s899 + $0x18] sm:$0xff]
    %v904 = vld [vmem:[%s899 + $0x20] sm:$0xff]
    %v905 = vld [vmem:[%s899 + $0x28] sm:$0xff]
    %v906 = vld [vmem:[%s899 + $0x30] sm:$0xff]
    %v907 = vld [vmem:[%s899 + $0x38] sm:$0xff]
    %v908 = vld [vmem:[%s899 + $0x40] sm:$0xff]
    %v909 = vld [vmem:[%s899 + $0x48] sm:$0xff]
    %v910 = vld [vmem:[%s899 + $0x50] sm:$0xff]
    %v911 = vld [vmem:[%s899 + $0x58] sm:$0xff]
    %v912 = vld [vmem:[%s899 + $0x60] sm:$0xff]
    %v913 = vld [vmem:[%s899 + $0x68] sm:$0xff]
    %v914 = vld [vmem:[%s899 + $0x70] sm:$0xff]
    %v915 = vld [vmem:[%s899 + $0x78] sm:$0xff]
    %v916 = vmul.f32 %v900, %v512
    %v917 = vmul.f32 %v901, %v515
    %v918 = vmul.f32 %v902, %v518
    %v919 = vmul.f32 %v903, %v521
    %v920 = vmul.f32 %v904, %v524
    %v921 = vmul.f32 %v905, %v527
    %v922 = vmul.f32 %v906, %v530
    %v923 = vmul.f32 %v907, %v533
    %v924 = vmul.f32 %v908, %v536
    %v925 = vmul.f32 %v909, %v539
    %v926 = vmul.f32 %v910, %v542
    %v927 = vmul.f32 %v911, %v545
    %v928 = vmul.f32 %v912, %v548
    %v929 = vmul.f32 %v913, %v551
    %v930 = vmul.f32 %v914, %v554
    %v931 = vmul.f32 %v915, %v557
    %v932 = vpack.c.bf16 %v916, %v916
    %v933 = vpack.c.bf16 %v917, %v917
    %v934 = vpack.c.bf16 %v918, %v918
    %v935 = vpack.c.bf16 %v919, %v919
    %v936 = vpack.c.bf16 %v920, %v920
    %v937 = vpack.c.bf16 %v921, %v921
    %v938 = vpack.c.bf16 %v922, %v922
    %v939 = vpack.c.bf16 %v923, %v923
    %v940 = vpack.c.bf16 %v924, %v924
    %v941 = vpack.c.bf16 %v925, %v925
    %v942 = vpack.c.bf16 %v926, %v926
    %v943 = vpack.c.bf16 %v927, %v927
    %v944 = vpack.c.bf16 %v928, %v928
    %v945 = vpack.c.bf16 %v929, %v929
    %v946 = vpack.c.bf16 %v930, %v930
    %v947 = vpack.c.bf16 %v931, %v931
    %948 = vst [vmem:[#allocation11] sm:$0xf] %v932
    %949 = vst [vmem:[#allocation11 + $0x4] sm:$0xf] %v933
    %950 = vst [vmem:[#allocation11 + $0x8] sm:$0xf] %v934
    %951 = vst [vmem:[#allocation11 + $0xc] sm:$0xf] %v935
    %952 = vst [vmem:[#allocation11 + $0x10] sm:$0xf] %v936
    %953 = vst [vmem:[#allocation11 + $0x14] sm:$0xf] %v937
    %954 = vst [vmem:[#allocation11 + $0x18] sm:$0xf] %v938
    %955 = vst [vmem:[#allocation11 + $0x1c] sm:$0xf] %v939
    %956 = vst [vmem:[#allocation11 + $0x20] sm:$0xf] %v940
    %957 = vst [vmem:[#allocation11 + $0x24] sm:$0xf] %v941
    %958 = vst [vmem:[#allocation11 + $0x28] sm:$0xf] %v942
    %959 = vst [vmem:[#allocation11 + $0x2c] sm:$0xf] %v943
    %960 = vst [vmem:[#allocation11 + $0x30] sm:$0xf] %v944
    %961 = vst [vmem:[#allocation11 + $0x34] sm:$0xf] %v945
    %962 = vst [vmem:[#allocation11 + $0x38] sm:$0xf] %v946
    %963 = vst [vmem:[#allocation11 + $0x3c] sm:$0xf] %v947
    // Predicated region
    $region25: #{tpu_custom_call.1} parent=1 // pred_check
      _
    $region26: #{tpu_custom_call.1} parent=1 // pred_check_branch
      %965 = sbr.rel (0) target = $region28
    $region27: #{tpu_custom_call.1} parent=1 // pred_region
      %967 = vsyncadd [#allocation4], 0
      %s968 = sshll.u32 [#allocation7], 4
      %s969 = int_to_ptr.vmem [resolvable:$true] %s968
      %s970 = sshll.u32 %s2, 4
      %s971 = int_to_ptr.hbm [resolvable:$true] %s970
      %976 = dma.vmem_to_hbm [thread:$0]  %s969, 2048, %s971, [#allocation4], 128, 128, 8
    $region28: #{tpu_custom_call.1} parent=1 // pred_fallthru
      _
    // Predicated region
    $region29: #{tpu_custom_call.1} parent=1 // pred_check
      _
    $region30: #{tpu_custom_call.1} parent=1 // pred_check_branch
      %978 = sbr.rel (0) target = $region32
    $region31: #{tpu_custom_call.1} parent=1 // pred_region
      %980 = vsyncadd [#allocation9], 0
      %s981 = sshll.u32 [#allocation8], 4
      %s982 = int_to_ptr.vmem [resolvable:$true] %s981
      %s983 = sshll.u32 %s3, 4
      %s984 = int_to_ptr.hbm [resolvable:$true] %s983
      %989 = dma.vmem_to_hbm [thread:$0]  %s982, 3072, %s984, [#allocation9], 192, 192, 12
    $region32: #{tpu_custom_call.1} parent=1 // pred_fallthru
      _
    // Predicated region
    $region33: #{tpu_custom_call.1} parent=1 // pred_check
      _
    $region34: #{tpu_custom_call.1} parent=1 // pred_check_branch
      %991 = sbr.rel (0) target = $region36
    $region35: #{tpu_custom_call.1} parent=1 // pred_region
      %993 = vsyncadd [#allocation9], 0
      %s994 = sshll.u32 [#allocation10], 4
      %s995 = int_to_ptr.vmem [resolvable:$true] %s994
      %s996 = sshll.u32 %s4, 4
      %s997 = int_to_ptr.hbm [resolvable:$true] %s996
      %1002 = dma.vmem_to_hbm [thread:$0]  %s995, 2048, %s997, [#allocation9], 128, 128, 8
    $region36: #{tpu_custom_call.1} parent=1 // pred_fallthru
      _
    // Predicated region
    $region37: #{tpu_custom_call.1} parent=1 // pred_check
      _
    $region38: #{tpu_custom_call.1} parent=1 // pred_check_branch
      %1004 = sbr.rel (0) target = $region40
    $region39: #{tpu_custom_call.1} parent=1 // pred_region
      %1006 = vsyncadd [#allocation12], 0
      %s1007 = sshll.u32 [#allocation11], 4
      %s1008 = int_to_ptr.vmem [resolvable:$true] %s1007
      %s1009 = sshll.u32 %s5, 4
      %s1010 = int_to_ptr.hbm [resolvable:$true] %s1009
      %1015 = dma.vmem_to_hbm [thread:$0]  %s1008, 1024, %s1010, [#allocation12], 64, 64, 4
    $region40: #{tpu_custom_call.1} parent=1 // pred_fallthru
      _
    // Predicated region
    $region41: #{tpu_custom_call.1} parent=1 // pred_check
      _
    $region42: #{tpu_custom_call.1} parent=1 // pred_check_branch
      %1017 = sbr.rel (0) target = $region44
    $region43: #{tpu_custom_call.1} parent=1 // pred_region
      %1019 = dma.done [#allocation4], 2048
    $region44: #{tpu_custom_call.1} parent=1 // pred_fallthru
      _
    // Predicated region
    $region45: #{tpu_custom_call.1} parent=1 // pred_check
      _
    $region46: #{tpu_custom_call.1} parent=1 // pred_check_branch
      %1021 = sbr.rel (0) target = $region48
    $region47: #{tpu_custom_call.1} parent=1 // pred_region
      %1023 = dma.done [#allocation9], 3072
    $region48: #{tpu_custom_call.1} parent=1 // pred_fallthru
      _
    // Predicated region
    $region49: #{tpu_custom_call.1} parent=1 // pred_check
      _
    $region50: #{tpu_custom_call.1} parent=1 // pred_check_branch
      %1025 = sbr.rel (0) target = $region52
    $region51: #{tpu_custom_call.1} parent=1 // pred_region
      %1027 = dma.done [#allocation9], 2048
    $region52: #{tpu_custom_call.1} parent=1 // pred_fallthru
      _
    // Predicated region
    $region53: #{tpu_custom_call.1} parent=1 // pred_check
      _
    $region54: #{tpu_custom_call.1} parent=1 // pred_check_branch
      %1029 = sbr.rel (0) target = $region56
    $region55: #{tpu_custom_call.1} parent=1 // pred_region
      %1031 = dma.done [#allocation12], 1024
    $region56: #{tpu_custom_call.1} parent=1 // pred_fallthru
      _
    %1032 = vsyncpa [#allocation3], 1
    %1033 = vsyncpa [#allocation6], 1
    %1034 = vsyncpa [#allocation4], 1
    %1035 = vsyncpa [#allocation9], 1
    %1036 = vsyncpa [#allocation12], 1

</llo_original>
